<compile_context>
chip_gen: v6e
topology: v6e:2x2x1
jax: 0.10.0
libtpu: 0.0.40
codegen_flags: <defaults>
</compile_context>

<pallas_src>
import functools

import jax
import jax.numpy as jnp
from jax.experimental import pallas as pl
from jax.experimental.pallas import tpu as pltpu


# ----------------------------------------------------------------------------
# Kernel
# ----------------------------------------------------------------------------
def dqn_kernel(x_ref, w1_ref, b1_ref, w2_ref, b2_ref, wq_ref, bq_ref, o_ref):
    """One batch tile: fc1 -> ReLU -> fc2 -> ReLU -> q (lane-dense padded)."""
    w1 = w1_ref[...]
    x = x_ref[...].astype(w1.dtype)

    # fc1 + ReLU  (MXU matmul, f32 accumulate)
    h1 = jnp.dot(x, w1, preferred_element_type=jnp.float32) + b1_ref[...]
    h1 = jnp.maximum(h1, 0.0)

    # fc2 + ReLU
    w2 = w2_ref[...]
    h2 = jnp.dot(h1.astype(w2.dtype), w2,
                 preferred_element_type=jnp.float32) + b2_ref[...]
    h2 = jnp.maximum(h2, 0.0)

    # q head (no activation). Output columns are pre-padded to a multiple of
    # 128, so this is a full unmasked lane-dense store.
    wq = wq_ref[...]
    q = jnp.dot(h2.astype(wq.dtype), wq,
                preferred_element_type=jnp.float32) + bq_ref[...]
    o_ref[...] = q.astype(o_ref.dtype)


# ----------------------------------------------------------------------------
# Param preparation (done ONCE, not per forward call)
# ----------------------------------------------------------------------------
def _round_up(x, m):
    return (x + m - 1) // m * m


def prepare_params(params, weight_dtype=jnp.float32):
    """Convert PyTorch nn.Linear params (out, in) -> kernel layout (in, out),
    reshape biases to (1, out), and zero-pad the q head to 128 lanes.

    Returns (array_params_dict, n_actions). Call once; reuse for every
    forward call so there are no per-call transpose/reshape ops.
    """
    n_actions = int(params["q_w"].shape[0])
    nq_pad = _round_up(max(n_actions, 1), 128)

    w1 = params["fc1_w"].T.astype(weight_dtype)          # (in, fc1)
    b1 = params["fc1_b"].reshape(1, -1).astype(jnp.float32)
    w2 = params["fc2_w"].T.astype(weight_dtype)          # (fc1, fc2)
    b2 = params["fc2_b"].reshape(1, -1).astype(jnp.float32)

    wq = params["q_w"].T.astype(weight_dtype)            # (fc2, n_actions)
    bq = params["q_b"].reshape(1, -1).astype(jnp.float32)
    wq = jnp.pad(wq, ((0, 0), (0, nq_pad - n_actions)))  # lane-dense pad
    bq = jnp.pad(bq, ((0, 0), (0, nq_pad - n_actions)))

    arrays = {"w1": w1, "b1": b1, "w2": w2, "b2": b2, "wq": wq, "bq": bq}
    return arrays, n_actions


# ----------------------------------------------------------------------------
# Forward (pad -> pallas_call -> slice, all inside one jit)
# ----------------------------------------------------------------------------
@functools.partial(jax.jit, static_argnames=("tb", "n_actions"))
def _dqn_forward(state, w1, b1, w2, b2, wq, bq, *, tb, n_actions):
    B, input_dim = state.shape
    nq_pad = wq.shape[1]

    b_pad = _round_up(B, tb)
    if b_pad != B:
        state = jnp.pad(state, ((0, b_pad - B), (0, 0)))

    grid = (b_pad // tb,)

    in_specs = [
        # x: tiled on the batch axis (pipelined)
        pl.BlockSpec((tb, input_dim), lambda i: (i, 0)),
        # weights / biases: constant index_map -> stay resident in VMEM
        pl.BlockSpec(w1.shape, lambda i: (0, 0)),
        pl.BlockSpec(b1.shape, lambda i: (0, 0)),
        pl.BlockSpec(w2.shape, lambda i: (0, 0)),
        pl.BlockSpec(b2.shape, lambda i: (0, 0)),
        pl.BlockSpec(wq.shape, lambda i: (0, 0)),
        pl.BlockSpec(bq.shape, lambda i: (0, 0)),
    ]
    out_specs = pl.BlockSpec((tb, nq_pad), lambda i: (i, 0))

    out = pl.pallas_call(
        dqn_kernel,
        grid=grid,
        in_specs=in_specs,
        out_specs=out_specs,
        out_shape=jax.ShapeDtypeStruct((b_pad, nq_pad), jnp.float32),
        compiler_params=pltpu.CompilerParams(
            dimension_semantics=("parallel",),   # batch axis -> both TCs on v7x
            vmem_limit_bytes=32 << 20,           # tiles are tiny; safe on v7x
        ),
    )(state, w1, b1, w2, b2, wq, bq)

    # Drop batch padding and the lane padding of the q head.
    return out[:B, :n_actions]


def dqn_forward(state, kparams, n_actions, tb=None):
    """state: (B, input_dim) f32. kparams: arrays from prepare_params()."""
    B = state.shape[0]
    if tb is None:
        # Multiple of 8 (f32 sublane). 512 rows amortizes the ~0.35us/step
        # grid overhead while keeping VMEM use tiny; small batches collapse to
        # a single grid step.
        tb = min(512, _round_up(B, 8))
    tb = _round_up(tb, 8)

    return _dqn_forward(
        state,
        kparams["w1"], kparams["b1"],
        kparams["w2"], kparams["b2"],
        kparams["wq"], kparams["bq"],
        tb=tb, n_actions=n_actions,
    )


# ----------------------------------------------------------------------------
# Reference + synthetic init (PyTorch nn.Linear layout)
# ----------------------------------------------------------------------------
def init_params(key, input_dim, fc1_dims, fc2_dims, n_actions):
    ks = jax.random.split(key, 6)

    def uniform(k, shape, fan_in):
        bound = 1.0 / jnp.sqrt(fan_in)
        return jax.random.uniform(k, shape, jnp.float32, -bound, bound)

    return {
        "fc1_w": uniform(ks[0], (fc1_dims, input_dim), input_dim),
        "fc1_b": uniform(ks[1], (fc1_dims,), input_dim),
        "fc2_w": uniform(ks[2], (fc2_dims, fc1_dims), fc1_dims),
        "fc2_b": uniform(ks[3], (fc2_dims,), fc1_dims),
        "q_w": uniform(ks[4], (n_actions, fc2_dims), fc2_dims),
        "q_b": uniform(ks[5], (n_actions,), fc2_dims),
    }


def dqn_forward_ref(state, params):
    h1 = jnp.maximum(state @ params["fc1_w"].T + params["fc1_b"], 0.0)
    h2 = jnp.maximum(h1 @ params["fc2_w"].T + params["fc2_b"], 0.0)
    return h2 @ params["q_w"].T + params["q_b"]


# TODO(synk): the Adam optimizer, MSELoss and checkpoint save/load in the
# PyTorch module are training / IO utilities, not part of the forward pass.

if __name__ == "__main__":
    key = jax.random.PRNGKey(0)
    kx, kp = jax.random.split(key)

    batch = 2
    input_dim = 16   # input_dims = (16,)
    fc1_dims = 32
    fc2_dims = 32
    n_actions = 8

    params = init_params(kp, input_dim, fc1_dims, fc2_dims, n_actions)
    kparams, n_act = prepare_params(params)   # one-time layout conversion
    state = jax.random.normal(kx, (batch, input_dim), dtype=jnp.float32)

    out = dqn_forward(state, kparams, n_act)
    out = jax.block_until_ready(out)

    ref = dqn_forward_ref(state, params)
    assert out.shape == (batch, n_actions)
    assert jnp.allclose(out, ref, atol=1e-5, rtol=1e-5), "mismatch vs reference"

    print("KERNEL_OK")
</pallas_src>

<mosaic_0001>
module attributes {stable_mosaic.version = 11 : i64} {
  func.func @dqn_kernel(%arg0: i32, %arg1: memref<8x16xf32, #tpu.memory_space<vmem>>, %arg2: memref<16x32xf32, #tpu.memory_space<vmem>>, %arg3: memref<1x32xf32, #tpu.memory_space<vmem>>, %arg4: memref<32x32xf32, #tpu.memory_space<vmem>>, %arg5: memref<1x32xf32, #tpu.memory_space<vmem>>, %arg6: memref<32x128xf32, #tpu.memory_space<vmem>>, %arg7: memref<1x128xf32, #tpu.memory_space<vmem>>, %arg8: memref<8x128xf32, #tpu.memory_space<vmem>>) attributes {dimension_semantics = [#tpu.dimension_semantics<parallel>], iteration_bounds = array<i64: 1>, scalar_prefetch = 0 : i64, scratch_operands = 0 : i64, tpu.core_type = #tpu.core_type<tc>, window_params = [{transform_indices = @transform_0, window_bounds = array<i64: 8, 16>}, {pipeline_mode = #tpu.pipeline_mode<synchronous>, transform_indices = @transform_1, window_bounds = array<i64: 16, 32>}, {pipeline_mode = #tpu.pipeline_mode<synchronous>, transform_indices = @transform_2, window_bounds = array<i64: 1, 32>}, {pipeline_mode = #tpu.pipeline_mode<synchronous>, transform_indices = @transform_3, window_bounds = array<i64: 32, 32>}, {pipeline_mode = #tpu.pipeline_mode<synchronous>, transform_indices = @transform_4, window_bounds = array<i64: 1, 32>}, {pipeline_mode = #tpu.pipeline_mode<synchronous>, transform_indices = @transform_5, window_bounds = array<i64: 32, 128>}, {pipeline_mode = #tpu.pipeline_mode<synchronous>, transform_indices = @transform_6, window_bounds = array<i64: 1, 128>}, {transform_indices = @transform_7, window_bounds = array<i64: 8, 128>}]} {
    %c0 = arith.constant 0 : index
    %c0_0 = arith.constant 0 : index
    %0 = vector.load %arg2[%c0, %c0_0] : memref<16x32xf32, #tpu.memory_space<vmem>>, vector<16x32xf32>
    %c0_1 = arith.constant 0 : index
    %c0_2 = arith.constant 0 : index
    %1 = vector.load %arg1[%c0_1, %c0_2] : memref<8x16xf32, #tpu.memory_space<vmem>>, vector<8x16xf32>
    %cst = arith.constant dense<0.000000e+00> : vector<8x32xf32>
    %2 = tpu.matmul %1, %0, %cst {dimension_numbers = #tpu.dot_dimension_numbers<[1], [0], [0], [1], [0, 0, 1, 1], [], []>} : vector<8x16xf32>, vector<16x32xf32>, vector<8x32xf32> -> vector<8x32xf32>
    %c0_3 = arith.constant 0 : index
    %c0_4 = arith.constant 0 : index
    %3 = vector.load %arg3[%c0_3, %c0_4] : memref<1x32xf32, #tpu.memory_space<vmem>>, vector<1x32xf32>
    %4 = vector.broadcast %3 : vector<1x32xf32> to vector<8x32xf32>
    %5 = arith.addf %2, %4 : vector<8x32xf32>
    %cst_5 = arith.constant 0.000000e+00 : f32
    %6 = vector.broadcast %cst_5 : f32 to vector<8x32xf32>
    %7 = arith.maximumf %5, %6 : vector<8x32xf32>
    %c0_6 = arith.constant 0 : index
    %c0_7 = arith.constant 0 : index
    %8 = vector.load %arg4[%c0_6, %c0_7] : memref<32x32xf32, #tpu.memory_space<vmem>>, vector<32x32xf32>
    %cst_8 = arith.constant dense<0.000000e+00> : vector<8x32xf32>
    %9 = tpu.matmul %7, %8, %cst_8 {dimension_numbers = #tpu.dot_dimension_numbers<[1], [0], [0], [1], [0, 0, 1, 1], [], []>} : vector<8x32xf32>, vector<32x32xf32>, vector<8x32xf32> -> vector<8x32xf32>
    %c0_9 = arith.constant 0 : index
    %c0_10 = arith.constant 0 : index
    %10 = vector.load %arg5[%c0_9, %c0_10] : memref<1x32xf32, #tpu.memory_space<vmem>>, vector<1x32xf32>
    %11 = vector.broadcast %10 : vector<1x32xf32> to vector<8x32xf32>
    %12 = arith.addf %9, %11 : vector<8x32xf32>
    %cst_11 = arith.constant 0.000000e+00 : f32
    %13 = vector.broadcast %cst_11 : f32 to vector<8x32xf32>
    %14 = arith.maximumf %12, %13 : vector<8x32xf32>
    %c0_12 = arith.constant 0 : index
    %c0_13 = arith.constant 0 : index
    %15 = vector.load %arg6[%c0_12, %c0_13] : memref<32x128xf32, #tpu.memory_space<vmem>>, vector<32x128xf32>
    %cst_14 = arith.constant dense<0.000000e+00> : vector<8x128xf32>
    %16 = tpu.matmul %14, %15, %cst_14 {dimension_numbers = #tpu.dot_dimension_numbers<[1], [0], [0], [1], [0, 0, 1, 1], [], []>} : vector<8x32xf32>, vector<32x128xf32>, vector<8x128xf32> -> vector<8x128xf32>
    %c0_15 = arith.constant 0 : index
    %c0_16 = arith.constant 0 : index
    %17 = vector.load %arg7[%c0_15, %c0_16] : memref<1x128xf32, #tpu.memory_space<vmem>>, vector<1x128xf32>
    %18 = vector.broadcast %17 : vector<1x128xf32> to vector<8x128xf32>
    %19 = arith.addf %16, %18 : vector<8x128xf32>
    %c0_17 = arith.constant 0 : index
    %c0_18 = arith.constant 0 : index
    %20 = vector.load %arg8[%c0_17, %c0_18] : memref<8x128xf32, #tpu.memory_space<vmem>>, vector<8x128xf32>
    tpu.vector_store %arg8[%c0_17, %c0_18], %19 {strides = array<i32>} : memref<8x128xf32, #tpu.memory_space<vmem>>, vector<8x128xf32>,
    return
  }
  func.func @transform_0(%arg0: i32) -> (i32, i32) {
    %c0_i32 = arith.constant 0 : i32
    %c0_i32_0 = arith.constant 0 : i32
    return %arg0, %c0_i32 : i32, i32
  }
  func.func @transform_1(%arg0: i32) -> (i32, i32) {
    %c0_i32 = arith.constant 0 : i32
    %c0_i32_0 = arith.constant 0 : i32
    %c0_i32_1 = arith.constant 0 : i32
    return %c0_i32, %c0_i32_0 : i32, i32
  }
  func.func @transform_2(%arg0: i32) -> (i32, i32) {
    %c0_i32 = arith.constant 0 : i32
    %c0_i32_0 = arith.constant 0 : i32
    %c0_i32_1 = arith.constant 0 : i32
    return %c0_i32, %c0_i32_0 : i32, i32
  }
  func.func @transform_3(%arg0: i32) -> (i32, i32) {
    %c0_i32 = arith.constant 0 : i32
    %c0_i32_0 = arith.constant 0 : i32
    %c0_i32_1 = arith.constant 0 : i32
    return %c0_i32, %c0_i32_0 : i32, i32
  }
  func.func @transform_4(%arg0: i32) -> (i32, i32) {
    %c0_i32 = arith.constant 0 : i32
    %c0_i32_0 = arith.constant 0 : i32
    %c0_i32_1 = arith.constant 0 : i32
    return %c0_i32, %c0_i32_0 : i32, i32
  }
  func.func @transform_5(%arg0: i32) -> (i32, i32) {
    %c0_i32 = arith.constant 0 : i32
    %c0_i32_0 = arith.constant 0 : i32
    %c0_i32_1 = arith.constant 0 : i32
    return %c0_i32, %c0_i32_0 : i32, i32
  }
  func.func @transform_6(%arg0: i32) -> (i32, i32) {
    %c0_i32 = arith.constant 0 : i32
    %c0_i32_0 = arith.constant 0 : i32
    %c0_i32_1 = arith.constant 0 : i32
    return %c0_i32, %c0_i32_0 : i32, i32
  }
  func.func @transform_7(%arg0: i32) -> (i32, i32) {
    %c0_i32 = arith.constant 0 : i32
    %c0_i32_0 = arith.constant 0 : i32
    return %arg0, %c0_i32 : i32, i32
  }
}

</mosaic_0001>

<llo_original>
// kernel: _dqn_forward.1
$region0: #{_dqn_forward.1}
  #allocation0 [shape = 'u32[]', space=smem, size = 0x4, offset = 0x4, fixed_abs, tag = 'smem constant byte address 0x4 - core index']
  #allocation1 [shape = 'u32[144,128]{1,0:T(1,128)}', space=vmem, size = 0x12000, scoped, tag = 'internal scratch']
  %s0 = inlined_call_operand.vmem [shape: f32[8,16], index: 0, kind: input, shape index: {}]
  %s1 = inlined_call_operand.hbm [shape: f32[16,32], index: 1, kind: input, shape index: {}]
  %s2 = inlined_call_operand.vmem [shape: f32[1,32], index: 2, kind: input, shape index: {}]
  %s3 = inlined_call_operand.hbm [shape: f32[32,32], index: 3, kind: input, shape index: {}]
  %s4 = inlined_call_operand.vmem [shape: f32[1,32], index: 4, kind: input, shape index: {}]
  %s5 = inlined_call_operand.hbm [shape: f32[32,128], index: 5, kind: input, shape index: {}]
  %s6 = inlined_call_operand.vmem [shape: f32[1,128], index: 6, kind: input, shape index: {}]
  %s7 = inlined_call_operand.vmem [shape: f32[8,128], index: 7, kind: output, shape index: {}]
  %s8 = sld [smem:[#allocation0]]
  $region50: #{_dqn_forward.1} parent=0
    _
  %s10 = ssub.s32 1, %s8
  %s11 = scalar_select 0, %s10, %s8
  $region1: #{_dqn_forward.1} parent=0
    #allocation2 [shape = 'u8[8192]{0}', space=vmem, size = 0x2000, scoped, tag = 'input window, operand 1, single buffered']
    #allocation3 [shape = 's32[1]{0}', space=sflag, size = 0x4, scoped, tag = 'scoped memory for _dqn_forward.1']
    #allocation4 [shape = 'u8[16384]{0}', space=vmem, size = 0x4000, scoped, tag = 'input window, operand 3, single buffered']
    #allocation5 [shape = 's32[1]{0}', space=sflag, size = 0x4, scoped, tag = 'scoped memory for _dqn_forward.1']
    #allocation6 [shape = 'u8[16384]{0}', space=vmem, size = 0x4000, scoped, tag = 'input window, operand 5, single buffered']
    %12 = vsyncpa [#allocation3], 0
    %13 = vsyncpa [#allocation5], 0
    // Predicated region
    $region2: #{_dqn_forward.1} parent=1 // pred_check
      _
    $region3: #{_dqn_forward.1} parent=1 // pred_check_branch
      %15 = sbr.rel (0) target = $region5
    $region4: #{_dqn_forward.1} parent=1 // pred_region
      _
    $region5: #{_dqn_forward.1} parent=1 // pred_fallthru
      _
    // Predicated region
    $region6: #{_dqn_forward.1} parent=1 // pred_check
      _
    $region7: #{_dqn_forward.1} parent=1 // pred_check_branch
      %17 = sbr.rel (0) target = $region9
    $region8: #{_dqn_forward.1} parent=1 // pred_region
      %s19 = ssub.s32 256, 256
      %20 = vsyncadd [#allocation3], %s19
      %s21 = sshll.u32 [#allocation2], 4
      %s22 = int_to_ptr.vmem [resolvable:$true] %s21
      %27 = dma.hbm_to_vmem [thread:$0]  %s1, 256, %s22, [#allocation3], 128, 128, 8
    $region9: #{_dqn_forward.1} parent=1 // pred_fallthru
      _
    // Predicated region
    $region10: #{_dqn_forward.1} parent=1 // pred_check
      _
    $region11: #{_dqn_forward.1} parent=1 // pred_check_branch
      %29 = sbr.rel (0) target = $region13
    $region12: #{_dqn_forward.1} parent=1 // pred_region
      _
    $region13: #{_dqn_forward.1} parent=1 // pred_fallthru
      _
    // Predicated region
    $region14: #{_dqn_forward.1} parent=1 // pred_check
      _
    $region15: #{_dqn_forward.1} parent=1 // pred_check_branch
      %31 = sbr.rel (0) target = $region17
    $region16: #{_dqn_forward.1} parent=1 // pred_region
      %s33 = ssub.s32 512, 512
      %34 = vsyncadd [#allocation5], %s33
      %s35 = sshll.u32 [#allocation4], 4
      %s36 = int_to_ptr.vmem [resolvable:$true] %s35
      %41 = dma.hbm_to_vmem [thread:$0]  %s3, 512, %s36, [#allocation5], 128, 128, 8
    $region17: #{_dqn_forward.1} parent=1 // pred_fallthru
      _
    // Predicated region
    $region18: #{_dqn_forward.1} parent=1 // pred_check
      _
    $region19: #{_dqn_forward.1} parent=1 // pred_check_branch
      %43 = sbr.rel (0) target = $region21
    $region20: #{_dqn_forward.1} parent=1 // pred_region
      _
    $region21: #{_dqn_forward.1} parent=1 // pred_fallthru
      _
    // Predicated region
    $region22: #{_dqn_forward.1} parent=1 // pred_check
      _
    $region23: #{_dqn_forward.1} parent=1 // pred_check_branch
      %45 = sbr.rel (0) target = $region25
    $region24: #{_dqn_forward.1} parent=1 // pred_region
      %s47 = ssub.s32 512, 512
      %48 = vsyncadd [#allocation5], %s47
      %s49 = sshll.u32 [#allocation6], 4
      %s50 = int_to_ptr.vmem [resolvable:$true] %s49
      %55 = dma.hbm_to_vmem [thread:$0]  %s5, 512, %s50, [#allocation5], 128, 128, 8
    $region25: #{_dqn_forward.1} parent=1 // pred_fallthru
      _
    // Predicated region
    $region26: #{_dqn_forward.1} parent=1 // pred_check
      _
    $region27: #{_dqn_forward.1} parent=1 // pred_check_branch
      %57 = sbr.rel (0) target = $region29
    $region28: #{_dqn_forward.1} parent=1 // pred_region
      _
    $region29: #{_dqn_forward.1} parent=1 // pred_fallthru
      _
    // Predicated region
    $region30: #{_dqn_forward.1} parent=1 // pred_check
      _
    $region31: #{_dqn_forward.1} parent=1 // pred_check_branch
      %59 = sbr.rel (0) target = $region33
    $region32: #{_dqn_forward.1} parent=1 // pred_region
      %60 = dma.done [#allocation3], 256
    $region33: #{_dqn_forward.1} parent=1 // pred_fallthru
      _
    // Predicated region
    $region34: #{_dqn_forward.1} parent=1 // pred_check
      _
    $region35: #{_dqn_forward.1} parent=1 // pred_check_branch
      %62 = sbr.rel (0) target = $region37
    $region36: #{_dqn_forward.1} parent=1 // pred_region
      %63 = dma.done [#allocation5], 512
    $region37: #{_dqn_forward.1} parent=1 // pred_fallthru
      _
    // Predicated region
    $region38: #{_dqn_forward.1} parent=1 // pred_check
      _
    $region39: #{_dqn_forward.1} parent=1 // pred_check_branch
      %65 = sbr.rel (0) target = $region41
    $region40: #{_dqn_forward.1} parent=1 // pred_region
      %66 = dma.done [#allocation5], 512
    $region41: #{_dqn_forward.1} parent=1 // pred_fallthru
      _
    %v67 = vld [vmem:[#allocation2] sm:$0xff]
    %v68 = vld [vmem:[#allocation2 + $0x8] sm:$0xff]
    %v69 = vld [vmem:[%s0] sm:$0xff]
    %v70 = vld [vmem:[%s2] sm:$0x1]
    %v72 = vlaneseq
    %v73 = vshrl.u32 %v72, 7
    %v74 = vsub.s32 0, %v73
    %v75 = vrot.slane %v70, %v74
    %vm77 = vcmask 130048
    %v79 = vsel %vm77, %v69, 0
    %81 = vmatprep.subr.mxu0 0.0
    %82 = vmatpush1.msra.mxu0 0.0
    %83 = vmatprep.subr.mxu0 0.0
    %84 = vmatpush1.msra.mxu0 0.0
    %85 = vmatprep.subr.mxu0 0.0
    %86 = vmatpush1.msra.mxu0 0.0
    %87 = vmatprep.subr.mxu0 0.0
    %88 = vmatpush1.msra.mxu0 0.0
    %89 = vmatprep.subr.mxu0 0.0
    %90 = vmatpush1.msra.mxu0 0.0
    %91 = vmatprep.subr.mxu0 0.0
    %92 = vmatpush1.msra.mxu0 0.0
    %93 = vmatprep.subr.mxu0 0.0
    %94 = vmatpush1.msra.mxu0 0.0
    %95 = vmatprep.subr.mxu0 0.0
    %96 = vmatpush1.msra.mxu0 0.0
    %97 = vmatprep.subr.mxu0 0.0
    %98 = vmatpush1.msra.mxu0 0.0
    %99 = vmatprep.subr.mxu0 0.0
    %100 = vmatpush1.msra.mxu0 0.0
    %101 = vmatprep.subr.mxu0 0.0
    %102 = vmatpush1.msra.mxu0 0.0
    %103 = vmatprep.subr.mxu0 0.0
    %104 = vmatpush1.msra.mxu0 0.0
    %105 = vmatprep.subr.mxu0 0.0
    %106 = vmatpush1.msra.mxu0 0.0
    %107 = vmatprep.subr.mxu0 0.0
    %108 = vmatpush1.msra.mxu0 0.0
    %109 = vmatprep.subr.mxu0 0.0
    %110 = vmatpush1.msra.mxu0 %v68
    %111 = vmatprep.subr.mxu0 0.0
    %112 = vmatpush1.msra.mxu0 %v67
    %113 = vmatprep.subr.mxu0 0.0
    %114 = vmatpush2.msra.mxu0 0.0
    %115 = vmatprep.subr.mxu0 0.0
    %116 = vmatpush2.msra.mxu0 0.0
    %117 = vmatprep.subr.mxu0 0.0
    %118 = vmatpush2.msra.mxu0 0.0
    %119 = vmatprep.subr.mxu0 0.0
    %120 = vmatpush2.msra.mxu0 0.0
    %121 = vmatprep.subr.mxu0 0.0
    %122 = vmatpush2.msra.mxu0 0.0
    %123 = vmatprep.subr.mxu0 0.0
    %124 = vmatpush2.msra.mxu0 0.0
    %125 = vmatprep.subr.mxu0 0.0
    %126 = vmatpush2.msra.mxu0 0.0
    %127 = vmatprep.subr.mxu0 0.0
    %128 = vmatpush2.msra.mxu0 0.0
    %129 = vmatprep.subr.mxu0 0.0
    %130 = vmatpush2.msra.mxu0 0.0
    %131 = vmatprep.subr.mxu0 0.0
    %132 = vmatpush2.msra.mxu0 0.0
    %133 = vmatprep.subr.mxu0 0.0
    %134 = vmatpush2.msra.mxu0 0.0
    %135 = vmatprep.subr.mxu0 0.0
    %136 = vmatpush2.msra.mxu0 0.0
    %137 = vmatprep.subr.mxu0 0.0
    %138 = vmatpush2.msra.mxu0 0.0
    %139 = vmatprep.subr.mxu0 0.0
    %140 = vmatpush2.msra.mxu0 0.0
    %141 = vmatprep.subr.mxu0 0.0
    %142 = vmatpush2.msra.mxu0 0.0
    %143 = vmatprep.subr.mxu0 0.0
    %144 = vmatpush2.msra.mxu0 0.0
    %145 = vmatprep.mubr.f32.mxu0 0.0
    %146 = vmatmul.mubr.f32.gmra.mxu0 %v79
    %v147 = vpop.f32.mrf.mxu0
    %v148 = vadd.f32 %v75, %v147
    %v149 = vpop.f32.mrf.mxu0
    %150 = vdwg.mxu0
    %v151 = vmax.f32 %v148, 0.0
    %v152 = vld [vmem:[#allocation4] sm:$0xff]
    %v153 = vld [vmem:[#allocation4 + $0x8] sm:$0xff]
    %v154 = vld [vmem:[#allocation4 + $0x10] sm:$0xff]
    %v155 = vld [vmem:[#allocation4 + $0x18] sm:$0xff]
    %v156 = vld [vmem:[%s4] sm:$0x1]
    %v158 = vlaneseq
    %v159 = vshrl.u32 %v158, 7
    %v160 = vsub.s32 0, %v159
    %v161 = vrot.slane %v156, %v160
    %vm163 = vcmask 261120
    %v165 = vsel %vm163, %v151, 0
    %167 = vmatprep.subr.mxu0 0.0
    %168 = vmatpush1.msra.mxu0 0.0
    %169 = vmatprep.subr.mxu0 0.0
    %170 = vmatpush1.msra.mxu0 0.0
    %171 = vmatprep.subr.mxu0 0.0
    %172 = vmatpush1.msra.mxu0 0.0
    %173 = vmatprep.subr.mxu0 0.0
    %174 = vmatpush1.msra.mxu0 0.0
    %175 = vmatprep.subr.mxu0 0.0
    %176 = vmatpush1.msra.mxu0 0.0
    %177 = vmatprep.subr.mxu0 0.0
    %178 = vmatpush1.msra.mxu0 0.0
    %179 = vmatprep.subr.mxu0 0.0
    %180 = vmatpush1.msra.mxu0 0.0
    %181 = vmatprep.subr.mxu0 0.0
    %182 = vmatpush1.msra.mxu0 0.0
    %183 = vmatprep.subr.mxu0 0.0
    %184 = vmatpush1.msra.mxu0 0.0
    %185 = vmatprep.subr.mxu0 0.0
    %186 = vmatpush1.msra.mxu0 0.0
    %187 = vmatprep.subr.mxu0 0.0
    %188 = vmatpush1.msra.mxu0 0.0
    %189 = vmatprep.subr.mxu0 0.0
    %190 = vmatpush1.msra.mxu0 0.0
    %191 = vmatprep.subr.mxu0 0.0
    %192 = vmatpush1.msra.mxu0 %v155
    %193 = vmatprep.subr.mxu0 0.0
    %194 = vmatpush1.msra.mxu0 %v154
    %195 = vmatprep.subr.mxu0 0.0
    %196 = vmatpush1.msra.mxu0 %v153
    %197 = vmatprep.subr.mxu0 0.0
    %198 = vmatpush1.msra.mxu0 %v152
    %199 = vmatprep.subr.mxu0 0.0
    %200 = vmatpush2.msra.mxu0 0.0
    %201 = vmatprep.subr.mxu0 0.0
    %202 = vmatpush2.msra.mxu0 0.0
    %203 = vmatprep.subr.mxu0 0.0
    %204 = vmatpush2.msra.mxu0 0.0
    %205 = vmatprep.subr.mxu0 0.0
    %206 = vmatpush2.msra.mxu0 0.0
    %207 = vmatprep.subr.mxu0 0.0
    %208 = vmatpush2.msra.mxu0 0.0
    %209 = vmatprep.subr.mxu0 0.0
    %210 = vmatpush2.msra.mxu0 0.0
    %211 = vmatprep.subr.mxu0 0.0
    %212 = vmatpush2.msra.mxu0 0.0
    %213 = vmatprep.subr.mxu0 0.0
    %214 = vmatpush2.msra.mxu0 0.0
    %215 = vmatprep.subr.mxu0 0.0
    %216 = vmatpush2.msra.mxu0 0.0
    %217 = vmatprep.subr.mxu0 0.0
    %218 = vmatpush2.msra.mxu0 0.0
    %219 = vmatprep.subr.mxu0 0.0
    %220 = vmatpush2.msra.mxu0 0.0
    %221 = vmatprep.subr.mxu0 0.0
    %222 = vmatpush2.msra.mxu0 0.0
    %223 = vmatprep.subr.mxu0 0.0
    %224 = vmatpush2.msra.mxu0 0.0
    %225 = vmatprep.subr.mxu0 0.0
    %226 = vmatpush2.msra.mxu0 0.0
    %227 = vmatprep.subr.mxu0 0.0
    %228 = vmatpush2.msra.mxu0 0.0
    %229 = vmatprep.subr.mxu0 0.0
    %230 = vmatpush2.msra.mxu0 0.0
    %231 = vmatprep.mubr.f32.mxu0 0.0
    %232 = vmatmul.mubr.f32.gmra.mxu0 %v165
    %v233 = vpop.f32.mrf.mxu0
    %v234 = vadd.f32 %v161, %v233
    %v235 = vpop.f32.mrf.mxu0
    %236 = vdwg.mxu0
    %v237 = vmax.f32 %v234, 0.0
    %v238 = vld [vmem:[#allocation6] sm:$0xff]
    %v239 = vld [vmem:[#allocation6 + $0x8] sm:$0xff]
    %v240 = vld [vmem:[#allocation6 + $0x10] sm:$0xff]
    %v241 = vld [vmem:[#allocation6 + $0x18] sm:$0xff]
    %v242 = vld [vmem:[%s6] sm:$0x1]
    %v244 = vlaneseq
    %v245 = vshrl.u32 %v244, 7
    %v246 = vsub.s32 0, %v245
    %v247 = vrot.slane %v242, %v246
    %v250 = vsel %vm163, %v237, 0
    %252 = vmatprep.subr.mxu0 0.0
    %253 = vmatpush1.msra.mxu0 0.0
    %254 = vmatprep.subr.mxu0 0.0
    %255 = vmatpush1.msra.mxu0 0.0
    %256 = vmatprep.subr.mxu0 0.0
    %257 = vmatpush1.msra.mxu0 0.0
    %258 = vmatprep.subr.mxu0 0.0
    %259 = vmatpush1.msra.mxu0 0.0
    %260 = vmatprep.subr.mxu0 0.0
    %261 = vmatpush1.msra.mxu0 0.0
    %262 = vmatprep.subr.mxu0 0.0
    %263 = vmatpush1.msra.mxu0 0.0
    %264 = vmatprep.subr.mxu0 0.0
    %265 = vmatpush1.msra.mxu0 0.0
    %266 = vmatprep.subr.mxu0 0.0
    %267 = vmatpush1.msra.mxu0 0.0
    %268 = vmatprep.subr.mxu0 0.0
    %269 = vmatpush1.msra.mxu0 0.0
    %270 = vmatprep.subr.mxu0 0.0
    %271 = vmatpush1.msra.mxu0 0.0
    %272 = vmatprep.subr.mxu0 0.0
    %273 = vmatpush1.msra.mxu0 0.0
    %274 = vmatprep.subr.mxu0 0.0
    %275 = vmatpush1.msra.mxu0 0.0
    %276 = vmatprep.subr.mxu0 0.0
    %277 = vmatpush1.msra.mxu0 %v241
    %278 = vmatprep.subr.mxu0 0.0
    %279 = vmatpush1.msra.mxu0 %v240
    %280 = vmatprep.subr.mxu0 0.0
    %281 = vmatpush1.msra.mxu0 %v239
    %282 = vmatprep.subr.mxu0 0.0
    %283 = vmatpush1.msra.mxu0 %v238
    %284 = vmatprep.subr.mxu0 0.0
    %285 = vmatpush2.msra.mxu0 0.0
    %286 = vmatprep.subr.mxu0 0.0
    %287 = vmatpush2.msra.mxu0 0.0
    %288 = vmatprep.subr.mxu0 0.0
    %289 = vmatpush2.msra.mxu0 0.0
    %290 = vmatprep.subr.mxu0 0.0
    %291 = vmatpush2.msra.mxu0 0.0
    %292 = vmatprep.subr.mxu0 0.0
    %293 = vmatpush2.msra.mxu0 0.0
    %294 = vmatprep.subr.mxu0 0.0
    %295 = vmatpush2.msra.mxu0 0.0
    %296 = vmatprep.subr.mxu0 0.0
    %297 = vmatpush2.msra.mxu0 0.0
    %298 = vmatprep.subr.mxu0 0.0
    %299 = vmatpush2.msra.mxu0 0.0
    %300 = vmatprep.subr.mxu0 0.0
    %301 = vmatpush2.msra.mxu0 0.0
    %302 = vmatprep.subr.mxu0 0.0
    %303 = vmatpush2.msra.mxu0 0.0
    %304 = vmatprep.subr.mxu0 0.0
    %305 = vmatpush2.msra.mxu0 0.0
    %306 = vmatprep.subr.mxu0 0.0
    %307 = vmatpush2.msra.mxu0 0.0
    %308 = vmatprep.subr.mxu0 0.0
    %309 = vmatpush2.msra.mxu0 0.0
    %310 = vmatprep.subr.mxu0 0.0
    %311 = vmatpush2.msra.mxu0 0.0
    %312 = vmatprep.subr.mxu0 0.0
    %313 = vmatpush2.msra.mxu0 0.0
    %314 = vmatprep.subr.mxu0 0.0
    %315 = vmatpush2.msra.mxu0 0.0
    %316 = vmatprep.mubr.f32.mxu0 0.0
    %317 = vmatmul.mubr.f32.gmra.mxu0 %v250
    %v318 = vpop.f32.mrf.mxu0
    %v319 = vadd.f32 %v247, %v318
    %v320 = vpop.f32.mrf.mxu0
    %321 = vdwg.mxu0
    %322 = vst [vmem:[%s7] sm:$0xff] %v319
    // Predicated region
    $region42: #{_dqn_forward.1} parent=1 // pred_check
      _
    $region43: #{_dqn_forward.1} parent=1 // pred_check_branch
      %324 = sbr.rel (0) target = $region45
    $region44: #{_dqn_forward.1} parent=1 // pred_region
      _
    $region45: #{_dqn_forward.1} parent=1 // pred_fallthru
      _
    // Predicated region
    $region46: #{_dqn_forward.1} parent=1 // pred_check
      _
    $region47: #{_dqn_forward.1} parent=1 // pred_check_branch
      %326 = sbr.rel (0) target = $region49
    $region48: #{_dqn_forward.1} parent=1 // pred_region
      _
    $region49: #{_dqn_forward.1} parent=1 // pred_fallthru
      _
    %327 = vsyncpa [#allocation3], 1
    %328 = vsyncpa [#allocation5], 1

</llo_original>
